<compile_context>
chip_gen: v7x
topology: tpu7x:2x2x1
jax: 0.10.0
libtpu: 0.0.40
codegen_flags: <defaults>
</compile_context>

<pallas_src>
import jax
import jax.numpy as jnp
import numpy as np
from jax import lax
from jax.experimental import pallas as pl
from jax.experimental.pallas import tpu as pltpu


# ----------------------------------------------------------------------------
# Pallas kernels / wrappers
# ----------------------------------------------------------------------------
def logeig_maxpool(V, e, kernel_size, stride):
    """Given eigendecomposition (V, e) of SPD matrices (M, n, n), compute
    MaxPool2d(kernel_size, stride)(logm(X)) per matrix.  Returns (M, no, no).
    """
    M, n, _ = V.shape
    nv = n - kernel_size + 1                      # valid window positions
    no = (n - kernel_size) // stride + 1          # pooled size
    e3 = e.reshape(M, 1, n)

    # 0/1 row-selection matrix for stride decimation (hoisted, built once).
    sel = (jnp.arange(nv, dtype=jnp.int32)[None, :]
           == (stride * jnp.arange(no, dtype=jnp.int32))[:, None]
           ).astype(jnp.float32)                  # (no, nv)

    # TODO(synk): for the kernel_size=101 module branches the static unroll of
    # the windowed max would blow up trace size; a log-time doubling max would
    # be needed there.  Fine for kernel_size in {2, 3}.
    def kernel(sel_ref, v_ref, e_ref, o_ref):
        v = v_ref[...]                                            # (n, n)
        log_e = jnp.log(e_ref[...])                               # (1, n)  EUP
        # logm(X) = V diag(log e) V^T : contract last dims of both operands
        # (A @ B^T form) -> single MXU matmul, no explicit transpose.
        L = lax.dot_general(v * log_e, v, (((1,), (1,)), ((), ())),
                            preferred_element_type=jnp.float32)   # (n, n)
        # Separable VALID windowed max (unit-stride shifted slices, VPU).
        mc = L[:, 0:nv]
        for kj in range(1, kernel_size):
            mc = jnp.maximum(mc, L[:, kj:kj + nv])                # (n, nv)
        m = mc[0:nv, :]
        for ki in range(1, kernel_size):
            m = jnp.maximum(m, mc[ki:ki + nv, :])                 # (nv, nv)
        # Stride decimation as exact 0/1 selection matmuls: out = S @ m @ S^T.
        s = sel_ref[...]                                          # (no, nv)
        tmp = jnp.dot(s, m, preferred_element_type=jnp.float32)   # (no, nv)
        o_ref[...] = lax.dot_general(tmp, s, (((1,), (1,)), ((), ())),
                                     preferred_element_type=jnp.float32)

    return pl.pallas_call(
        kernel,
        out_shape=jax.ShapeDtypeStruct((M, no, no), jnp.float32),
        grid=(M,),
        in_specs=[
            pl.BlockSpec((no, nv), lambda m: (0, 0)),             # constant
            pl.BlockSpec((None, n, n), lambda m: (m, 0, 0)),
            pl.BlockSpec((None, 1, n), lambda m: (m, 0, 0)),
        ],
        out_specs=pl.BlockSpec((None, no, no), lambda m: (m, 0, 0)),
        compiler_params=pltpu.CompilerParams(
            dimension_semantics=("parallel",)),
    )(sel, V, e3)


def _expeig_kernel(v_ref, e_ref, o_ref):
    v = v_ref[...]                                                # (n, n)
    exp_e = jnp.exp(e_ref[...])                                   # (1, n) EUP
    o_ref[...] = lax.dot_general(v * exp_e, v, (((1,), (1,)), ((), ())),
                                 preferred_element_type=jnp.float32)


def expeig(V, e):
    """expm via eigendecomposition recomposition: V diag(exp e) V^T."""
    M, n, _ = V.shape
    e3 = e.reshape(M, 1, n)
    return pl.pallas_call(
        _expeig_kernel,
        out_shape=jax.ShapeDtypeStruct((M, n, n), jnp.float32),
        grid=(M,),
        in_specs=[
            pl.BlockSpec((None, n, n), lambda m: (m, 0, 0)),
            pl.BlockSpec((None, 1, n), lambda m: (m, 0, 0)),
        ],
        out_specs=pl.BlockSpec((None, n, n), lambda m: (m, 0, 0)),
        compiler_params=pltpu.CompilerParams(
            dimension_semantics=("parallel",)),
    )(V, e3)


# ----------------------------------------------------------------------------
# JAX glue (eigendecomposition only)
# ----------------------------------------------------------------------------
def _eigh_sym(x):
    # TODO(synk): symmetric eigendecomposition (LogEig/ExpEig) has no clean
    # Pallas equivalent; it stays in plain JAX via jnp.linalg.eigh.
    x = 0.5 * (x + jnp.swapaxes(x, -1, -2))
    return jnp.linalg.eigh(x)


def spd_max_pooling_forward(x, kernel_size, stride):
    """x: (B, C, n, n) SPD stacks.  Returns (B, C, no, no)."""
    B, C, n, _ = x.shape
    xf = x.reshape(B * C, n, n)
    e1, V1 = _eigh_sym(xf)                                # JAX: eigh for LogEig
    P = logeig_maxpool(V1, e1, kernel_size, stride)       # Pallas: logm + maxpool
    e2, V2 = _eigh_sym(P)                                 # JAX: eigh for ExpEig
    out = expeig(V2, e2)                                  # Pallas: expm recompose
    no = P.shape[-1]
    return out.reshape(B, C, no, no)


# ----------------------------------------------------------------------------
# Pure-JAX reference (same math, no Pallas) for a numeric sanity check
# ----------------------------------------------------------------------------
def _sym_matrix_fn(x, fn):
    x = 0.5 * (x + jnp.swapaxes(x, -1, -2))
    e, v = jnp.linalg.eigh(x)
    return jnp.einsum('...ik,...k,...jk->...ij', v, fn(e), v,
                      precision=lax.Precision.HIGHEST)


def reference_forward(x, kernel_size, stride):
    L = _sym_matrix_fn(x, jnp.log)
    P = lax.reduce_window(L, -jnp.inf, lax.max,
                          (1, 1, kernel_size, kernel_size),
                          (1, 1, stride, stride), 'VALID')
    return _sym_matrix_fn(P, jnp.exp)


if __name__ == "__main__":
    # Small demo consistent with the dim_in=100 -> dim_out=50 branch
    # (MaxPool2d(2, stride=2)): here n=16 -> 8.
    B, C, n = 2, 4, 16
    kernel_size, stride = 2, 2

    key = jax.random.PRNGKey(0)
    A = jax.random.normal(key, (B, C, n, n), dtype=jnp.float32)
    # Deterministic, well-conditioned SPD inputs: x = I + 0.1 * A A^T
    x = 0.1 * jnp.einsum('bcij,bckj->bcik', A, A) + jnp.eye(n, dtype=jnp.float32)

    out = spd_max_pooling_forward(x, kernel_size, stride)
    out = jax.block_until_ready(out)
    no = (n - kernel_size) // stride + 1
    assert out.shape == (B, C, no, no)

    ref = reference_forward(x, kernel_size, stride)
    np.testing.assert_allclose(np.asarray(out), np.asarray(ref),
                               rtol=2e-2, atol=2e-2)
    print("KERNEL_OK")
</pallas_src>

<mosaic_0001>
module attributes {stable_mosaic.version = 11 : i64} {
  func.func @kernel(%arg0: i32, %arg1: memref<8x15xf32, #tpu.memory_space<vmem>>, %arg2: memref<1x16x16xf32, #tpu.memory_space<vmem>>, %arg3: memref<1x1x16xf32, #tpu.memory_space<vmem>>, %arg4: memref<1x8x8xf32, #tpu.memory_space<vmem>>) attributes {dimension_semantics = [#tpu.dimension_semantics<parallel>], iteration_bounds = array<i64: 8>, scalar_prefetch = 0 : i64, scratch_operands = 0 : i64, tpu.core_type = #tpu.core_type<tc>, window_params = [{pipeline_mode = #tpu.pipeline_mode<synchronous>, transform_indices = @transform_0, window_bounds = array<i64: 8, 15>}, {transform_indices = @transform_1, window_bounds = array<i64: 1, 16, 16>}, {transform_indices = @transform_2, window_bounds = array<i64: 1, 1, 16>}, {transform_indices = @transform_3, window_bounds = array<i64: 1, 8, 8>}]} {
    %c0 = arith.constant 0 : index
    %c0_0 = arith.constant 0 : index
    %c0_1 = arith.constant 0 : index
    %0 = vector.load %arg2[%c0, %c0_0, %c0_1] : memref<1x16x16xf32, #tpu.memory_space<vmem>>, vector<1x16x16xf32>
    %1 = vector.shape_cast %0 : vector<1x16x16xf32> to vector<16x16xf32>
    %c0_2 = arith.constant 0 : index
    %c0_3 = arith.constant 0 : index
    %c0_4 = arith.constant 0 : index
    %2 = vector.load %arg3[%c0_2, %c0_3, %c0_4] : memref<1x1x16xf32, #tpu.memory_space<vmem>>, vector<1x1x16xf32>
    %3 = vector.shape_cast %2 : vector<1x1x16xf32> to vector<1x16xf32>
    %4 = math.log %3 : vector<1x16xf32>
    %5 = vector.broadcast %4 : vector<1x16xf32> to vector<16x16xf32>
    %6 = arith.mulf %1, %5 : vector<16x16xf32>
    %cst = arith.constant dense<0.000000e+00> : vector<16x16xf32>
    %7 = tpu.matmul %6, %1, %cst {dimension_numbers = #tpu.dot_dimension_numbers<[1], [1], [0], [0], [0, 0, 1, 0], [], []>} : vector<16x16xf32>, vector<16x16xf32>, vector<16x16xf32> -> vector<16x16xf32>
    %8 = vector.extract_strided_slice %7 {offsets = [0, 0], sizes = [16, 15], strides = [1, 1]} : vector<16x16xf32> to vector<16x15xf32>
    %9 = vector.extract_strided_slice %7 {offsets = [0, 1], sizes = [16, 15], strides = [1, 1]} : vector<16x16xf32> to vector<16x15xf32>
    %10 = arith.maximumf %8, %9 : vector<16x15xf32>
    %11 = vector.extract_strided_slice %10 {offsets = [0, 0], sizes = [15, 15], strides = [1, 1]} : vector<16x15xf32> to vector<15x15xf32>
    %12 = vector.extract_strided_slice %10 {offsets = [1, 0], sizes = [15, 15], strides = [1, 1]} : vector<16x15xf32> to vector<15x15xf32>
    %13 = arith.maximumf %11, %12 : vector<15x15xf32>
    %c0_5 = arith.constant 0 : index
    %c0_6 = arith.constant 0 : index
    %14 = vector.load %arg1[%c0_5, %c0_6] : memref<8x15xf32, #tpu.memory_space<vmem>>, vector<8x15xf32>
    %cst_7 = arith.constant dense<0.000000e+00> : vector<8x15xf32>
    %15 = tpu.matmul %14, %13, %cst_7 {dimension_numbers = #tpu.dot_dimension_numbers<[1], [0], [0], [1], [0, 0, 1, 1], [], []>} : vector<8x15xf32>, vector<15x15xf32>, vector<8x15xf32> -> vector<8x15xf32>
    %cst_8 = arith.constant dense<0.000000e+00> : vector<8x8xf32>
    %16 = tpu.matmul %15, %14, %cst_8 {dimension_numbers = #tpu.dot_dimension_numbers<[1], [1], [0], [0], [0, 0, 1, 0], [], []>} : vector<8x15xf32>, vector<8x15xf32>, vector<8x8xf32> -> vector<8x8xf32>
    %c0_9 = arith.constant 0 : index
    %c0_10 = arith.constant 0 : index
    %c0_11 = arith.constant 0 : index
    %17 = vector.load %arg4[%c0_9, %c0_10, %c0_11] : memref<1x8x8xf32, #tpu.memory_space<vmem>>, vector<1x8x8xf32>
    %18 = vector.shape_cast %17 : vector<1x8x8xf32> to vector<8x8xf32>
    %19 = vector.shape_cast %16 : vector<8x8xf32> to vector<1x8x8xf32>
    tpu.vector_store %arg4[%c0_9, %c0_10, %c0_11], %19 {strides = array<i32>} : memref<1x8x8xf32, #tpu.memory_space<vmem>>, vector<1x8x8xf32>,
    return
  }
  func.func @transform_0(%arg0: i32) -> (i32, i32) {
    %c0_i32 = arith.constant 0 : i32
    %c0_i32_0 = arith.constant 0 : i32
    %c0_i32_1 = arith.constant 0 : i32
    return %c0_i32, %c0_i32_0 : i32, i32
  }
  func.func @transform_1(%arg0: i32) -> (i32, i32, i32) {
    %c0_i32 = arith.constant 0 : i32
    %c0_i32_0 = arith.constant 0 : i32
    %c0_i32_1 = arith.constant 0 : i32
    return %arg0, %c0_i32, %c0_i32_0 : i32, i32, i32
  }
  func.func @transform_2(%arg0: i32) -> (i32, i32, i32) {
    %c0_i32 = arith.constant 0 : i32
    %c0_i32_0 = arith.constant 0 : i32
    %c0_i32_1 = arith.constant 0 : i32
    return %arg0, %c0_i32, %c0_i32_0 : i32, i32, i32
  }
  func.func @transform_3(%arg0: i32) -> (i32, i32, i32) {
    %c0_i32 = arith.constant 0 : i32
    %c0_i32_0 = arith.constant 0 : i32
    %c0_i32_1 = arith.constant 0 : i32
    return %arg0, %c0_i32, %c0_i32_0 : i32, i32, i32
  }
}

</mosaic_0001>

<llo_original>
// kernel: tpu_custom_call.1
$region0: #{tpu_custom_call.1}
  #allocation0 [shape = 'u32[]', space=smem, size = 0x4, offset = 0x4, fixed_abs, tag = 'smem constant byte address 0x4 - core index']
  #allocation1 [shape = 'u32[144,128]{1,0:T(1,128)}', space=vmem, size = 0x12000, scoped, tag = 'internal scratch']
  %s0 = inlined_call_operand.hbm [shape: f32[8,15], index: 0, kind: input, shape index: {}]
  %s1 = inlined_call_operand.hbm [shape: f32[8,16,16], index: 1, kind: input, shape index: {}]
  %s2 = inlined_call_operand.hbm [shape: f32[8,1,16], index: 2, kind: input, shape index: {}]
  %s3 = inlined_call_operand.hbm [shape: f32[8,8,8], index: 3, kind: output, shape index: {}]
  %s4 = sld [smem:[#allocation0]]
  $region57: #{tpu_custom_call.1} parent=0
    _
  %s6 = ssub.s32 1, %s4
  %s7 = scalar_select 0, %s6, %s4
  $region1: #{tpu_custom_call.1} parent=0
    #allocation2 [shape = 'u8[4096]{0}', space=vmem, size = 0x1000, scoped, tag = 'input window, operand 0, single buffered']
    #allocation3 [shape = 's32[2]{0}', space=sflag, size = 0x8, scoped, tag = 'scoped memory for tpu_custom_call.1']
    #allocation4 [shape = 's32[2]{0}', space=sflag, size = 0x8, scoped, tag = 'scoped memory for tpu_custom_call.1']
    #allocation5 [shape = 'u8[16384]{0}', space=vmem, size = 0x4000, scoped, tag = 'input window, operand 1']
    #allocation6 [shape = 's32[2]{0}', space=sflag, size = 0x8, scoped, tag = 'scoped memory for tpu_custom_call.1']
    #allocation7 [shape = 'u8[1024]{0}', space=vmem, size = 0x400, scoped, tag = 'input window, operand 2']
    #allocation8 [shape = 'u8[8192]{0}', space=vmem, size = 0x2000, scoped, tag = 'output window, operand 0']
    %8 = vsyncpa [#allocation3], 0
    %9 = vsyncpa [#allocation6], 0
    %s10 = scalar_lea.sflag [#allocation6], 1
    %11 = vsyncpa %s10, 0
    %12 = vsyncpa [#allocation4], 0
    %s13 = scalar_lea.sflag [#allocation4], 1
    %14 = vsyncpa %s13, 0
    loop: start=0, step=1, limit=10
    $region2: #{tpu_custom_call.1} parent=1 // loop_pre_header
      _
    $region3: #{tpu_custom_call.1} parent=1 // loop_header
      %s16 = sphi 0, %s20
      %p17 = scmp.ge.s32.totalorder %s16, 10
      %s24 = sphi 0, %s24
      %s26 = sphi 0, %s24
      %s27 = sphi 0, %s26
      %s41 = sphi 0, %s27
      %s47 = sphi 0, %s49
      %s50 = sphi 0, %s47
      %s51 = sphi 0, %s50
      %s67 = sphi 0, %s51
      %s73 = sphi 0, %s75
      %s76 = sphi 0, %s73
      %s77 = sphi 0, %s76
      %s93 = sphi 0, %s77
      %s99 = sphi 0, %s101
      %s102 = sphi 0, %s99
      %s103 = sphi 0, %s102
      %s119 = sphi 0, %s103
    $region4: #{tpu_custom_call.1} parent=1 // loop_header_branch
      %19 = sbr.rel (%p17) target = $region8
    $region5: #{tpu_custom_call.1} parent=1 // loop_body
      %s21 = ssub.s32 %s16, 1
      %s22 = ssub.s32 %s16, 2
      %s23 = sadd.s32 %s16, 1
      %s25 = sadd.s32 %s24, 1
      %p28 = scmp.eq.s32.totalorder %s16, 7
      %p29 = scmp.ne.s32.totalorder %s24, %s26
      %p30 = scmp.eq.s32.totalorder %s16, 0
      %p31 = por %p29, %p30
      %p32 = scmp.ne.s32.totalorder %s24, %s26
      %p33 = scmp.eq.s32.totalorder %s21, 7
      %p34 = por %p32, %p33
      %p35 = scmp.ne.s32.totalorder %s26, %s27
      %p36 = scmp.eq.s32.totalorder %s21, 0
      %p37 = por %p35, %p36
      %p38 = scmp.ne.s32.totalorder %s26, %s27
      %p39 = scmp.eq.s32.totalorder %s22, 7
      %p40 = por %p38, %p39
      %p42 = scmp.ne.s32.totalorder %s27, %s41
      %p43 = scmp.eq.s32.totalorder %s22, 0
      %p44 = por %p42, %p43
      %s45 = ssub.s32 %s16, %s23
      %p46 = scmp.eq.s32.totalorder %s45, 0
      %s48 = sadd.s32 %s47, 1
      %s49 = scalar_select %p46, %s47, %s48
      %p52 = pneg %p46
      %p53 = scmp.eq.s32.totalorder %s16, 7
      %p54 = por %p52, %p53
      %p55 = scmp.ne.s32.totalorder %s47, %s50
      %p56 = scmp.eq.s32.totalorder %s16, 0
      %p57 = por %p55, %p56
      %p58 = scmp.ne.s32.totalorder %s47, %s50
      %p59 = scmp.eq.s32.totalorder %s21, 7
      %p60 = por %p58, %p59
      %p61 = scmp.ne.s32.totalorder %s50, %s51
      %p62 = scmp.eq.s32.totalorder %s21, 0
      %p63 = por %p61, %p62
      %p64 = scmp.ne.s32.totalorder %s50, %s51
      %p65 = scmp.eq.s32.totalorder %s22, 7
      %p66 = por %p64, %p65
      %p68 = scmp.ne.s32.totalorder %s51, %s67
      %p69 = scmp.eq.s32.totalorder %s22, 0
      %p70 = por %p68, %p69
      %s71 = ssub.s32 %s16, %s23
      %p72 = scmp.eq.s32.totalorder %s71, 0
      %s74 = sadd.s32 %s73, 1
      %s75 = scalar_select %p72, %s73, %s74
      %p78 = pneg %p72
      %p79 = scmp.eq.s32.totalorder %s16, 7
      %p80 = por %p78, %p79
      %p81 = scmp.ne.s32.totalorder %s73, %s76
      %p82 = scmp.eq.s32.totalorder %s16, 0
      %p83 = por %p81, %p82
      %p84 = scmp.ne.s32.totalorder %s73, %s76
      %p85 = scmp.eq.s32.totalorder %s21, 7
      %p86 = por %p84, %p85
      %p87 = scmp.ne.s32.totalorder %s76, %s77
      %p88 = scmp.eq.s32.totalorder %s21, 0
      %p89 = por %p87, %p88
      %p90 = scmp.ne.s32.totalorder %s76, %s77
      %p91 = scmp.eq.s32.totalorder %s22, 7
      %p92 = por %p90, %p91
      %p94 = scmp.ne.s32.totalorder %s77, %s93
      %p95 = scmp.eq.s32.totalorder %s22, 0
      %p96 = por %p94, %p95
      %s97 = ssub.s32 %s16, %s23
      %p98 = scmp.eq.s32.totalorder %s97, 0
      %s100 = sadd.s32 %s99, 1
      %s101 = scalar_select %p98, %s99, %s100
      %p104 = pneg %p98
      %p105 = scmp.eq.s32.totalorder %s16, 7
      %p106 = por %p104, %p105
      %p107 = scmp.ne.s32.totalorder %s99, %s102
      %p108 = scmp.eq.s32.totalorder %s16, 0
      %p109 = por %p107, %p108
      %p110 = scmp.ne.s32.totalorder %s99, %s102
      %p111 = scmp.eq.s32.totalorder %s21, 7
      %p112 = por %p110, %p111
      %p113 = scmp.ne.s32.totalorder %s102, %s103
      %p114 = scmp.eq.s32.totalorder %s21, 0
      %p115 = por %p113, %p114
      %p116 = scmp.ne.s32.totalorder %s102, %s103
      %p117 = scmp.eq.s32.totalorder %s22, 7
      %p118 = por %p116, %p117
      %p120 = scmp.ne.s32.totalorder %s103, %s119
      %p121 = scmp.eq.s32.totalorder %s22, 0
      %p122 = por %p120, %p121
      %p123 = scmp.le.s32.totalorder 1, %s16
      %p124 = scmp.lt.s32.totalorder %s16, 9
      %p125 = pnand %p123, %p124
      %p126 = pneg %p125
      // Predicated region
      $region9: #{tpu_custom_call.1} parent=5 // pred_check
        _
      $region10: #{tpu_custom_call.1} parent=5 // pred_check_branch
        %128 = sbr.rel (%p125) target = $region12
      $region11: #{tpu_custom_call.1} parent=5 // pred_region
        %s129 = ssub.s32 %s16, 1
        // Predicated region
        $region13: #{tpu_custom_call.1} parent=11 // pred_check
          %p130 = pneg %p37
        $region14: #{tpu_custom_call.1} parent=11 // pred_check_branch
          %132 = sbr.rel (%p130) target = $region16
        $region15: #{tpu_custom_call.1} parent=11 // pred_region
          %s134 = ssub.s32 128, 128
          %135 = vsyncadd [#allocation3], %s134
          %s137 = sshll.u32 [#allocation2], 4
          %s138 = int_to_ptr.vmem [resolvable:$true] %s137
          %140 = dma.hbm_to_vmem [thread:$0]  %s0, 128, %s138, [#allocation3]
        $region16: #{tpu_custom_call.1} parent=11 // pred_fallthru
          _
      $region12: #{tpu_custom_call.1} parent=5 // pred_fallthru
        _
      %p141 = scmp.lt.s32.totalorder %s16, 8
      // Predicated region
      $region17: #{tpu_custom_call.1} parent=5 // pred_check
        %p142 = pneg %p141
      $region18: #{tpu_custom_call.1} parent=5 // pred_check_branch
        %144 = sbr.rel (%p142) target = $region20
      $region19: #{tpu_custom_call.1} parent=5 // pred_region
        // Predicated region
        $region21: #{tpu_custom_call.1} parent=19 // pred_check
          %p145 = pneg %p57
        $region22: #{tpu_custom_call.1} parent=19 // pred_check_branch
          %147 = sbr.rel (%p145) target = $region24
        $region23: #{tpu_custom_call.1} parent=19 // pred_region
          %s148 = sand.u32 %s16, 1
          %s149 = scalar_lea.sflag [#allocation6], %s148
          %s150 = sand.u32 %s47, 1
          %s151 = smul.addr %s150, 16
          %s152 = scalar_lea.vmem [#allocation5], %s151
          %s154 = ssub.s32 256, 256
          %155 = vsyncadd %s149, %s154
          %s156 = smul.addr %s16, 2
          %s157 = smul.addr %s156, 128
          %s158 = scalar_lea.hbm %s1, %s157
          %s159 = sshll.u32 %s152, 4
          %s160 = int_to_ptr.vmem [resolvable:$true] %s159
          %165 = dma.hbm_to_vmem [thread:$0]  %s158, 256, %s160, %s149, 128, 128, 8
        $region24: #{tpu_custom_call.1} parent=19 // pred_fallthru
          _
        // Predicated region
        $region25: #{tpu_custom_call.1} parent=19 // pred_check
          %p166 = pneg %p83
        $region26: #{tpu_custom_call.1} parent=19 // pred_check_branch
          %168 = sbr.rel (%p166) target = $region28
        $region27: #{tpu_custom_call.1} parent=19 // pred_region
          %s169 = sand.u32 %s16, 1
          %s170 = scalar_lea.sflag [#allocation6], %s169
          %s171 = sand.u32 %s73, 1
          %s172 = scalar_lea.vmem [#allocation7], %s171
          %s174 = ssub.s32 16, 16
          %175 = vsyncadd %s170, %s174
          %s176 = smul.addr %s16, 16
          %s177 = scalar_lea.hbm %s2, %s176
          %s179 = sshll.u32 %s172, 4
          %s180 = int_to_ptr.vmem [resolvable:$true] %s179
          %182 = dma.hbm_to_vmem [thread:$0]  %s177, 16, %s180, %s170
        $region28: #{tpu_custom_call.1} parent=19 // pred_fallthru
          _
      $region20: #{tpu_custom_call.1} parent=5 // pred_fallthru
        _
      %p183 = scmp.le.s32.totalorder 1, %s16
      %p184 = scmp.lt.s32.totalorder %s16, 9
      %p185 = pnand %p183, %p184
      %p186 = pneg %p185
      // Predicated region
      $region29: #{tpu_custom_call.1} parent=5 // pred_check
        _
      $region30: #{tpu_custom_call.1} parent=5 // pred_check_branch
        %188 = sbr.rel (%p185) target = $region32
      $region31: #{tpu_custom_call.1} parent=5 // pred_region
        %s189 = ssub.s32 %s16, 1
        // Predicated region
        $region33: #{tpu_custom_call.1} parent=31 // pred_check
          %p190 = pneg %p37
        $region34: #{tpu_custom_call.1} parent=31 // pred_check_branch
          %192 = sbr.rel (%p190) target = $region36
        $region35: #{tpu_custom_call.1} parent=31 // pred_region
          %193 = dma.done [#allocation3], 128
        $region36: #{tpu_custom_call.1} parent=31 // pred_fallthru
          _
        %s194 = sand.u32 %s21, 1
        %s195 = scalar_lea.sflag [#allocation6], %s194
        %s196 = sand.u32 %s50, 1
        %s197 = smul.addr %s196, 16
        %s198 = scalar_lea.vmem [#allocation5], %s197
        // Predicated region
        $region37: #{tpu_custom_call.1} parent=31 // pred_check
          %p199 = pneg %p63
        $region38: #{tpu_custom_call.1} parent=31 // pred_check_branch
          %201 = sbr.rel (%p199) target = $region40
        $region39: #{tpu_custom_call.1} parent=31 // pred_region
          %202 = dma.done %s195, 256
        $region40: #{tpu_custom_call.1} parent=31 // pred_fallthru
          _
        %s203 = sand.u32 %s21, 1
        %s204 = scalar_lea.sflag [#allocation6], %s203
        %s205 = sand.u32 %s76, 1
        %s206 = scalar_lea.vmem [#allocation7], %s205
        // Predicated region
        $region41: #{tpu_custom_call.1} parent=31 // pred_check
          %p207 = pneg %p89
        $region42: #{tpu_custom_call.1} parent=31 // pred_check_branch
          %209 = sbr.rel (%p207) target = $region44
        $region43: #{tpu_custom_call.1} parent=31 // pred_region
          %210 = dma.done %s204, 16
        $region44: #{tpu_custom_call.1} parent=31 // pred_fallthru
          _
        %p211 = pneg %p37
        %p212 = pneg %p34
        %s213 = sand.u32 %s21, 1
        %s214 = scalar_lea.sflag [#allocation6], %s213
        %s215 = sand.u32 %s50, 1
        %s216 = smul.addr %s215, 16
        %s217 = scalar_lea.vmem [#allocation5], %s216
        %p218 = pneg %p63
        %p219 = pneg %p60
        %s220 = sand.u32 %s21, 1
        %s221 = scalar_lea.sflag [#allocation6], %s220
        %s222 = sand.u32 %s76, 1
        %s223 = scalar_lea.vmem [#allocation7], %s222
        %p224 = pneg %p89
        %p225 = pneg %p86
        %p226 = pneg %p115
        %p227 = pneg %p112
        %s228 = sand.u32 %s102, 1
        %s229 = scalar_lea.sflag [#allocation4], %s228
        %s230 = sand.u32 %s102, 1
        %s231 = smul.addr %s230, 8
        %s232 = scalar_lea.vmem [#allocation8], %s231
        %v233 = vld [vmem:[%s198] sm:$0xff]
        %v234 = vld [vmem:[%s198 + $0x8] sm:$0xff]
        %v235 = vld [vmem:[%s206] sm:$0x1]
        %v236 = vlog2.pop %v235
        %v237 = vmul.f32 %v236, 0.6931472
        %v239 = vlaneseq
        %v240 = vshrl.u32 %v239, 7
        %v241 = vsub.s32 0, %v240
        %v242 = vrot.slane %v237, %v241
        %v244 = vmul.f32 %v233, %v242
        %v245 = vmul.f32 %v234, %v242
        %vm246 = vcmask 130048
        %v248 = vsel %vm246, %v244, 0
        %v251 = vsel %vm246, %v245, 0
        %v254 = vsel %vm246, %v233, 0
        %v257 = vsel %vm246, %v234, 0
        %259 = vmatprep.subr.mxu0 0.0
        %260 = vmatpush1.xpose.msra.mxu0 %v254
        %261 = vmatprep.subr.mxu0 0.0
        %262 = vmatpush1.xpose.msra.mxu0 %v257
        %263 = vmatprep.subr.mxu0 0.0
        %264 = vmatpush1.xpose.msra.mxu0 0.0
        %265 = vmatprep.subr.mxu0 0.0
        %266 = vmatpush1.xpose.msra.mxu0 0.0
        %267 = vmatprep.subr.mxu0 0.0
        %268 = vmatpush1.xpose.msra.mxu0 0.0
        %269 = vmatprep.subr.mxu0 0.0
        %270 = vmatpush1.xpose.msra.mxu0 0.0
        %271 = vmatprep.subr.mxu0 0.0
        %272 = vmatpush1.xpose.msra.mxu0 0.0
        %273 = vmatprep.subr.mxu0 0.0
        %274 = vmatpush1.xpose.msra.mxu0 0.0
        %275 = vmatprep.subr.mxu0 0.0
        %276 = vmatpush1.xpose.msra.mxu0 0.0
        %277 = vmatprep.subr.mxu0 0.0
        %278 = vmatpush1.xpose.msra.mxu0 0.0
        %279 = vmatprep.subr.mxu0 0.0
        %280 = vmatpush1.xpose.msra.mxu0 0.0
        %281 = vmatprep.subr.mxu0 0.0
        %282 = vmatpush1.xpose.msra.mxu0 0.0
        %283 = vmatprep.subr.mxu0 0.0
        %284 = vmatpush1.xpose.msra.mxu0 0.0
        %285 = vmatprep.subr.mxu0 0.0
        %286 = vmatpush1.xpose.msra.mxu0 0.0
        %287 = vmatprep.subr.mxu0 0.0
        %288 = vmatpush1.xpose.msra.mxu0 0.0
        %289 = vmatprep.subr.mxu0 0.0
        %290 = vmatpush1.xpose.msra.mxu0 0.0
        %291 = vmatprep.subr.mxu0 0.0
        %292 = vmatpush1.xpose.msra.mxu0 0.0
        %293 = vmatprep.subr.mxu0 0.0
        %294 = vmatpush1.xpose.msra.mxu0 0.0
        %295 = vmatprep.subr.mxu0 0.0
        %296 = vmatpush1.xpose.msra.mxu0 0.0
        %297 = vmatprep.subr.mxu0 0.0
        %298 = vmatpush1.xpose.msra.mxu0 0.0
        %299 = vmatprep.subr.mxu0 0.0
        %300 = vmatpush1.xpose.msra.mxu0 0.0
        %301 = vmatprep.subr.mxu0 0.0
        %302 = vmatpush1.xpose.msra.mxu0 0.0
        %303 = vmatprep.subr.mxu0 0.0
        %304 = vmatpush1.xpose.msra.mxu0 0.0
        %305 = vmatprep.subr.mxu0 0.0
        %306 = vmatpush1.xpose.msra.mxu0 0.0
        %307 = vmatprep.subr.mxu0 0.0
        %308 = vmatpush1.xpose.msra.mxu0 0.0
        %309 = vmatprep.subr.mxu0 0.0
        %310 = vmatpush1.xpose.msra.mxu0 0.0
        %311 = vmatprep.subr.mxu0 0.0
        %312 = vmatpush1.xpose.msra.mxu0 0.0
        %313 = vmatprep.subr.mxu0 0.0
        %314 = vmatpush1.xpose.msra.mxu0 0.0
        %315 = vmatprep.subr.mxu0 0.0
        %316 = vmatpush1.xpose.msra.mxu0 0.0
        %317 = vmatprep.subr.mxu0 0.0
        %318 = vmatpush1.xpose.msra.mxu0 0.0
        %319 = vmatprep.subr.mxu0 0.0
        %320 = vmatpush1.xpose.msra.mxu0 0.0
        %321 = vmatprep.subr.mxu0 0.0
        %322 = vmatpush1.xpose.msra.mxu0 0.0
        %323 = vmatprep.mubr.f32.mxu0 0.0
        %324 = vmatmul.mubr.f32.gmra.mrb[0].mxu0 %v248
        %v325 = vpop.f32.mrb[0].mxu0
        %v326 = vadd.f32 0.0, %v325
        %v327 = vpop.f32.mrb[0].mxu0
        %328 = vmatprep.mubr.f32.mxu0 0.0
        %329 = vmatmul.mubr.f32.gmra.mrb[0].mxu0 %v251
        %v330 = vpop.f32.mrb[0].mxu0
        %v331 = vadd.f32 0.0, %v330
        %v332 = vpop.f32.mrb[0].mxu0
        %333 = vdwg.mxu0
        %336 = vrot.lane.b32.xlu0 %v326, 127
        %v337 = vpop.permute.xlu0 %336
        %338 = vrot.lane.b32.xlu0 %v331, 127
        %v339 = vpop.permute.xlu0 %338
        %v342 = vmax.f32 %v326, %v337
        %v343 = vmax.f32 %v331, %v339
        %vm346 = vcmask 1046528
        %v347 = vrot.slane %v342, 1
        %v348 = vrot.slane %v343, 1
        %v349 = vsel %vm346, %v347, %v348
        %v352 = vmax.f32 %v342, %v349
        %v353 = vmax.f32 %v343, %v348
        %v354 = vld [vmem:[#allocation2] sm:$0xff]
        %vm355 = vcmask 121856
        %v357 = vsel %vm355, %v354, 0
        %v360 = vsel %vm346, %v353, 0
        %362 = vmatprep.subr.mxu0 0.0
        %363 = vmatpush1.msra.mxu0 %v352
        %364 = vmatprep.subr.mxu0 0.0
        %365 = vmatpush1.msra.mxu0 %v360
        %366 = vmatprep.subr.mxu0 0.0
        %367 = vmatpush1.msra.mxu0 0.0
        %368 = vmatprep.subr.mxu0 0.0
        %369 = vmatpush1.msra.mxu0 0.0
        %370 = vmatprep.subr.mxu0 0.0
        %371 = vmatpush1.msra.mxu0 0.0
        %372 = vmatprep.subr.mxu0 0.0
        %373 = vmatpush1.msra.mxu0 0.0
        %374 = vmatprep.subr.mxu0 0.0
        %375 = vmatpush1.msra.mxu0 0.0
        %376 = vmatprep.subr.mxu0 0.0
        %377 = vmatpush1.msra.mxu0 0.0
        %378 = vmatprep.subr.mxu0 0.0
        %379 = vmatpush1.msra.mxu0 0.0
        %380 = vmatprep.subr.mxu0 0.0
        %381 = vmatpush1.msra.mxu0 0.0
        %382 = vmatprep.subr.mxu0 0.0
        %383 = vmatpush1.msra.mxu0 0.0
        %384 = vmatprep.subr.mxu0 0.0
        %385 = vmatpush1.msra.mxu0 0.0
        %386 = vmatprep.subr.mxu0 0.0
        %387 = vmatpush1.msra.mxu0 0.0
        %388 = vmatprep.subr.mxu0 0.0
        %389 = vmatpush1.msra.mxu0 0.0
        %390 = vmatprep.subr.mxu0 0.0
        %391 = vmatpush1.msra.mxu0 0.0
        %392 = vmatprep.subr.mxu0 0.0
        %393 = vmatpush1.msra.mxu0 0.0
        %394 = vmatprep.subr.mxu0 0.0
        %395 = vmatpush1.msra.mxu0 0.0
        %396 = vmatprep.subr.mxu0 0.0
        %397 = vmatpush1.msra.mxu0 0.0
        %398 = vmatprep.subr.mxu0 0.0
        %399 = vmatpush1.msra.mxu0 0.0
        %400 = vmatprep.subr.mxu0 0.0
        %401 = vmatpush1.msra.mxu0 0.0
        %402 = vmatprep.subr.mxu0 0.0
        %403 = vmatpush1.msra.mxu0 0.0
        %404 = vmatprep.subr.mxu0 0.0
        %405 = vmatpush1.msra.mxu0 0.0
        %406 = vmatprep.subr.mxu0 0.0
        %407 = vmatpush1.msra.mxu0 0.0
        %408 = vmatprep.subr.mxu0 0.0
        %409 = vmatpush1.msra.mxu0 0.0
        %410 = vmatprep.subr.mxu0 0.0
        %411 = vmatpush1.msra.mxu0 0.0
        %412 = vmatprep.subr.mxu0 0.0
        %413 = vmatpush1.msra.mxu0 0.0
        %414 = vmatprep.subr.mxu0 0.0
        %415 = vmatpush1.msra.mxu0 0.0
        %416 = vmatprep.subr.mxu0 0.0
        %417 = vmatpush1.msra.mxu0 0.0
        %418 = vmatprep.subr.mxu0 0.0
        %419 = vmatpush1.msra.mxu0 0.0
        %420 = vmatprep.subr.mxu0 0.0
        %421 = vmatpush1.msra.mxu0 0.0
        %422 = vmatprep.subr.mxu0 0.0
        %423 = vmatpush1.msra.mxu0 0.0
        %424 = vmatprep.subr.mxu0 0.0
        %425 = vmatpush1.msra.mxu0 0.0
        %426 = vmatprep.mubr.f32.mxu0 0.0
        %427 = vmatmul.mubr.f32.gmra.mrb[0].mxu0 %v357
        %v428 = vpop.f32.mrb[0].mxu0
        %v429 = vadd.f32 0.0, %v428
        %v430 = vpop.f32.mrb[0].mxu0
        %431 = vdwg.mxu0
        %v433 = vsel %vm355, %v429, 0
        %435 = vmatprep.subr.mxu0 0.0
        %436 = vmatpush1.xpose.msra.mxu0 %v357
        %437 = vmatprep.subr.mxu0 0.0
        %438 = vmatpush1.xpose.msra.mxu0 0.0
        %439 = vmatprep.subr.mxu0 0.0
        %440 = vmatpush1.xpose.msra.mxu0 0.0
        %441 = vmatprep.subr.mxu0 0.0
        %442 = vmatpush1.xpose.msra.mxu0 0.0
        %443 = vmatprep.subr.mxu0 0.0
        %444 = vmatpush1.xpose.msra.mxu0 0.0
        %445 = vmatprep.subr.mxu0 0.0
        %446 = vmatpush1.xpose.msra.mxu0 0.0
        %447 = vmatprep.subr.mxu0 0.0
        %448 = vmatpush1.xpose.msra.mxu0 0.0
        %449 = vmatprep.subr.mxu0 0.0
        %450 = vmatpush1.xpose.msra.mxu0 0.0
        %451 = vmatprep.subr.mxu0 0.0
        %452 = vmatpush1.xpose.msra.mxu0 0.0
        %453 = vmatprep.subr.mxu0 0.0
        %454 = vmatpush1.xpose.msra.mxu0 0.0
        %455 = vmatprep.subr.mxu0 0.0
        %456 = vmatpush1.xpose.msra.mxu0 0.0
        %457 = vmatprep.subr.mxu0 0.0
        %458 = vmatpush1.xpose.msra.mxu0 0.0
        %459 = vmatprep.subr.mxu0 0.0
        %460 = vmatpush1.xpose.msra.mxu0 0.0
        %461 = vmatprep.subr.mxu0 0.0
        %462 = vmatpush1.xpose.msra.mxu0 0.0
        %463 = vmatprep.subr.mxu0 0.0
        %464 = vmatpush1.xpose.msra.mxu0 0.0
        %465 = vmatprep.subr.mxu0 0.0
        %466 = vmatpush1.xpose.msra.mxu0 0.0
        %467 = vmatprep.subr.mxu0 0.0
        %468 = vmatpush1.xpose.msra.mxu0 0.0
        %469 = vmatprep.subr.mxu0 0.0
        %470 = vmatpush1.xpose.msra.mxu0 0.0
        %471 = vmatprep.subr.mxu0 0.0
        %472 = vmatpush1.xpose.msra.mxu0 0.0
        %473 = vmatprep.subr.mxu0 0.0
        %474 = vmatpush1.xpose.msra.mxu0 0.0
        %475 = vmatprep.subr.mxu0 0.0
        %476 = vmatpush1.xpose.msra.mxu0 0.0
        %477 = vmatprep.subr.mxu0 0.0
        %478 = vmatpush1.xpose.msra.mxu0 0.0
        %479 = vmatprep.subr.mxu0 0.0
        %480 = vmatpush1.xpose.msra.mxu0 0.0
        %481 = vmatprep.subr.mxu0 0.0
        %482 = vmatpush1.xpose.msra.mxu0 0.0
        %483 = vmatprep.subr.mxu0 0.0
        %484 = vmatpush1.xpose.msra.mxu0 0.0
        %485 = vmatprep.subr.mxu0 0.0
        %486 = vmatpush1.xpose.msra.mxu0 0.0
        %487 = vmatprep.subr.mxu0 0.0
        %488 = vmatpush1.xpose.msra.mxu0 0.0
        %489 = vmatprep.subr.mxu0 0.0
        %490 = vmatpush1.xpose.msra.mxu0 0.0
        %491 = vmatprep.subr.mxu0 0.0
        %492 = vmatpush1.xpose.msra.mxu0 0.0
        %493 = vmatprep.subr.mxu0 0.0
        %494 = vmatpush1.xpose.msra.mxu0 0.0
        %495 = vmatprep.subr.mxu0 0.0
        %496 = vmatpush1.xpose.msra.mxu0 0.0
        %497 = vmatprep.subr.mxu0 0.0
        %498 = vmatpush1.xpose.msra.mxu0 0.0
        %499 = vmatprep.mubr.f32.mxu0 0.0
        %500 = vmatmul.mubr.f32.gmra.mrb[0].mxu0 %v433
        %v501 = vpop.f32.mrb[0].mxu0
        %v502 = vadd.f32 0.0, %v501
        %v503 = vpop.f32.mrb[0].mxu0
        %504 = vdwg.mxu0
        %vm505 = vcmask 64512
        %506 = vst.msk [vmem:[%s232] sm:$0xff] %vm505, %v502
        %s507 = sand.u32 %s102, 1
        %s508 = scalar_lea.sflag [#allocation4], %s507
        %s509 = sand.u32 %s102, 1
        %s510 = smul.addr %s509, 8
        %s511 = scalar_lea.vmem [#allocation8], %s510
        // Predicated region
        $region45: #{tpu_custom_call.1} parent=31 // pred_check
          %p512 = pneg %p112
        $region46: #{tpu_custom_call.1} parent=31 // pred_check_branch
          %514 = sbr.rel (%p512) target = $region48
        $region47: #{tpu_custom_call.1} parent=31 // pred_region
          %s516 = ssub.s32 128, 128
          %517 = vsyncadd %s508, %s516
          %s518 = smul.addr %s21, 128
          %s519 = scalar_lea.hbm %s3, %s518
          %s521 = sshll.u32 %s511, 4
          %s522 = int_to_ptr.vmem [resolvable:$true] %s521
          %524 = dma.vmem_to_hbm [thread:$0]  %s522, 128, %s519, %s508
        $region48: #{tpu_custom_call.1} parent=31 // pred_fallthru
          _
      $region32: #{tpu_custom_call.1} parent=5 // pred_fallthru
        _
      %p525 = scmp.le.s32.totalorder 2, %s16
      // Predicated region
      $region49: #{tpu_custom_call.1} parent=5 // pred_check
        %p526 = pneg %p525
      $region50: #{tpu_custom_call.1} parent=5 // pred_check_branch
        %528 = sbr.rel (%p526) target = $region52
      $region51: #{tpu_custom_call.1} parent=5 // pred_region
        %s529 = ssub.s32 %s16, 2
        // Predicated region
        $region53: #{tpu_custom_call.1} parent=51 // pred_check
          %p530 = pneg %p118
        $region54: #{tpu_custom_call.1} parent=51 // pred_check_branch
          %532 = sbr.rel (%p530) target = $region56
        $region55: #{tpu_custom_call.1} parent=51 // pred_region
          %s533 = sand.u32 %s103, 1
          %s534 = scalar_lea.sflag [#allocation4], %s533
          %s535 = sand.u32 %s103, 1
          %s536 = smul.addr %s535, 8
          %s537 = scalar_lea.vmem [#allocation8], %s536
          %538 = dma.done %s534, 128
        $region56: #{tpu_custom_call.1} parent=51 // pred_fallthru
          _
      $region52: #{tpu_custom_call.1} parent=5 // pred_fallthru
        _
    $region6: #{tpu_custom_call.1} parent=1 // loop_footer
      %s20 = sadd.s32 1, %s16
    $region7: #{tpu_custom_call.1} parent=1 // loop_footer_branch
      %15 = sbr.rel target = $region3
    $region8: #{tpu_custom_call.1} parent=1 // loop_exit
      _
    %539 = vsyncpa [#allocation3], 1
    %s540 = scalar_lea.sflag [#allocation3], 1
    %541 = vsyncpa %s540, 1
    %542 = vsyncpa [#allocation6], 1
    %s543 = scalar_lea.sflag [#allocation6], 1
    %544 = vsyncpa %s543, 1
    %545 = vsyncpa [#allocation4], 1
    %s546 = scalar_lea.sflag [#allocation4], 1
    %547 = vsyncpa %s546, 1

</llo_original>
